<compile_context>
chip_gen: v7x
topology: tpu7x:2x2x1
jax: 0.10.0
libtpu: 0.0.40
codegen_flags: <defaults>
</compile_context>

<pallas_src>
import functools

import jax
import jax.numpy as jnp
from jax.experimental import pallas as pl
from jax.experimental.pallas import tpu as pltpu


# --------------------------------------------------------------------------- #
# Kernel 1: fused QKV projection                                              #
# --------------------------------------------------------------------------- #
def _qkv_proj_kernel(x_ref, w_ref, b_ref, q_ref, k_ref, v_ref, *, hidden):
    # x_ref: (tm, H) f32, w_ref: (H, 3H) bf16, b_ref: (1, 3H) f32
    x = x_ref[...].astype(jnp.bfloat16)
    y = jnp.dot(x, w_ref[...], preferred_element_type=jnp.float32) + b_ref[...]
    # Static lane slices of the fused projection; bf16 outputs halve HBM traffic.
    q_ref[...] = y[:, :hidden].astype(q_ref.dtype)
    k_ref[...] = y[:, hidden:2 * hidden].astype(k_ref.dtype)
    v_ref[...] = y[:, 2 * hidden:].astype(v_ref.dtype)


# --------------------------------------------------------------------------- #
# Kernel 2: flash attention (online softmax over KV tiles)                    #
# --------------------------------------------------------------------------- #
def _flash_attn_kernel(q_ref, k_ref, v_ref, o_ref, m_sc, l_sc, acc_sc):
    ki = pl.program_id(2)

    @pl.when(ki == 0)
    def _init():
        m_sc[...] = jnp.full_like(m_sc, -jnp.inf)
        l_sc[...] = jnp.zeros_like(l_sc)
        acc_sc[...] = jnp.zeros_like(acc_sc)

    q = q_ref[...]        # (tq, hd) bf16 — 1/sqrt(hd) already folded into the projection
    k = k_ref[...]        # (tk, hd) bf16
    v = v_ref[...]        # (tk, hd) bf16

    # NT matmul: contract the head dim of both operands directly on the MXU
    # (no explicit k.T / XLU transpose).  f32 accumulation.
    s = jax.lax.dot_general(q, k, (((1,), (1,)), ((), ())),
                            preferred_element_type=jnp.float32)      # (tq, tk) f32

    # Online (flash) softmax — all reductions / exp in f32.
    m_prev = m_sc[...]
    m_new = jnp.maximum(m_prev, jnp.max(s, axis=-1, keepdims=True))
    alpha = jnp.exp(m_prev - m_new)
    p = jnp.exp(s - m_new)
    l_sc[...] = alpha * l_sc[...] + jnp.sum(p, axis=-1, keepdims=True)
    acc_sc[...] = alpha * acc_sc[...] + jnp.dot(
        p.astype(jnp.bfloat16), v, preferred_element_type=jnp.float32)
    m_sc[...] = m_new
    # TODO(synk): nn.Dropout on attention_probs is omitted (inference/eval semantics).
    # TODO(synk): no attention mask — tile sizes always divide S exactly (see _pick_tile),
    #             so no key padding is introduced that would need masking.

    @pl.when(ki == pl.num_programs(2) - 1)
    def _finalize():
        inv_l = pl.reciprocal(l_sc[...], approx=True)                # EUP slot, ~free
        o_ref[...] = (acc_sc[...] * inv_l).astype(o_ref.dtype)


# --------------------------------------------------------------------------- #
# Wrapper                                                                     #
# --------------------------------------------------------------------------- #
def _pick_tile(n, preferred):
    """Largest candidate tile <= n that divides n exactly; falls back to n (full dim)."""
    for t in (preferred, 512, 256, 128, 64, 32, 16):
        if t <= n and n % t == 0:
            return t
    return n


def self_attention(hidden_states, wq, bq, wk, bk, wv, bv, *, num_heads,
                   row_tile=256, q_tile=256, kv_tile=512):
    B, S, H = hidden_states.shape
    assert H % num_heads == 0
    hd = H // num_heads
    scale = 1.0 / (float(hd) ** 0.5)

    # Fuse the three projections into one (H, 3H) bf16 weight; fold the softmax
    # scale into the query weights/bias (zero in-kernel cost).
    w_qkv = jnp.concatenate([wq * scale, wk, wv], axis=1).astype(jnp.bfloat16)   # (H, 3H)
    b_qkv = jnp.concatenate(
        [bq.reshape(-1) * scale, bk.reshape(-1), bv.reshape(-1)]
    ).reshape(1, 3 * H).astype(jnp.float32)                                       # (1, 3H)

    M = B * S
    x2d = hidden_states.reshape(M, H)
    tm = _pick_tile(M, row_tile)

    # NOTE: for very large H the (H, 3H) bf16 weight block (6*H^2 bytes) should get
    # its own output-dim grid axis; 48 MiB scoped VMEM fits all gens (v7x = 64 MiB).
    vmem_limit = 48 * 1024 * 1024

    q2d, k2d, v2d = pl.pallas_call(
        functools.partial(_qkv_proj_kernel, hidden=H),
        out_shape=[jax.ShapeDtypeStruct((M, H), jnp.bfloat16)] * 3,
        grid=(M // tm,),
        in_specs=[
            pl.BlockSpec((tm, H), lambda m: (m, 0)),       # x rows
            pl.BlockSpec((H, 3 * H), lambda m: (0, 0)),    # fused QKV weight (bf16)
            pl.BlockSpec((1, 3 * H), lambda m: (0, 0)),    # fused bias (f32)
        ],
        out_specs=[pl.BlockSpec((tm, H), lambda m: (m, 0))] * 3,
        compiler_params=pltpu.CompilerParams(
            dimension_semantics=("parallel",),
            vmem_limit_bytes=vmem_limit),
    )(x2d, w_qkv, b_qkv)

    # transpose_for_scores at XLA level: (M, H) -> (B*num_heads, S, hd), head-major,
    # so attention blocks are lane-dense (last dim == full hd).
    def to_heads(t):
        return (t.reshape(B, S, num_heads, hd)
                 .transpose(0, 2, 1, 3)
                 .reshape(B * num_heads, S, hd))

    qh, kh, vh = to_heads(q2d), to_heads(k2d), to_heads(v2d)

    tq = _pick_tile(S, q_tile)
    tk = _pick_tile(S, kv_tile)
    G = B * num_heads

    ctx = pl.pallas_call(
        _flash_attn_kernel,
        out_shape=jax.ShapeDtypeStruct((G, S, hd), jnp.float32),
        grid=(G, S // tq, S // tk),
        in_specs=[
            pl.BlockSpec((None, tq, hd), lambda g, qi, ki: (g, qi, 0)),   # Q
            pl.BlockSpec((None, tk, hd), lambda g, qi, ki: (g, ki, 0)),   # K
            pl.BlockSpec((None, tk, hd), lambda g, qi, ki: (g, ki, 0)),   # V
        ],
        out_specs=pl.BlockSpec((None, tq, hd), lambda g, qi, ki: (g, qi, 0)),
        scratch_shapes=[
            pltpu.VMEM((tq, 1), jnp.float32),    # running max m
            pltpu.VMEM((tq, 1), jnp.float32),    # running denom l
            pltpu.VMEM((tq, hd), jnp.float32),   # running context accumulator
        ],
        compiler_params=pltpu.CompilerParams(
            dimension_semantics=("parallel", "parallel", "arbitrary"),
            vmem_limit_bytes=vmem_limit),
    )(qh, kh, vh)

    # permute(0,2,1,3).contiguous().view(..., all_head_size)
    return (ctx.reshape(B, num_heads, S, hd)
               .transpose(0, 2, 1, 3)
               .reshape(B, S, H))


# --------------------------------------------------------------------------- #
# Pure-JAX reference (f32)                                                    #
# --------------------------------------------------------------------------- #
def _reference(x, wq, bq, wk, bk, wv, bv, num_heads):
    B, S, H = x.shape
    hd = H // num_heads
    q = x @ wq + bq
    k = x @ wk + bk
    v = x @ wv + bv

    def split(t):
        return t.reshape(B, S, num_heads, hd).transpose(0, 2, 1, 3)

    qh, kh, vh = split(q), split(k), split(v)
    scores = jnp.einsum('bhqd,bhkd->bhqk', qh, kh) / (hd ** 0.5)
    probs = jax.nn.softmax(scores, axis=-1)
    ctx = jnp.einsum('bhqk,bhkd->bhqd', probs, vh)
    return ctx.transpose(0, 2, 1, 3).reshape(B, S, H)


if __name__ == "__main__":
    B, S = 2, 8
    hidden_size = 32
    num_attention_heads = 4

    key = jax.random.PRNGKey(0)
    kx, kq, kbq, kk, kbk, kv, kbv = jax.random.split(key, 7)

    x = jax.random.normal(kx, (B, S, hidden_size), dtype=jnp.float32)

    bound = 1.0 / (hidden_size ** 0.5)
    wq = jax.random.uniform(kq, (hidden_size, hidden_size), jnp.float32, -bound, bound)
    bq = jax.random.uniform(kbq, (hidden_size,), jnp.float32, -bound, bound)
    wk = jax.random.uniform(kk, (hidden_size, hidden_size), jnp.float32, -bound, bound)
    bk = jax.random.uniform(kbk, (hidden_size,), jnp.float32, -bound, bound)
    wv = jax.random.uniform(kv, (hidden_size, hidden_size), jnp.float32, -bound, bound)
    bv = jax.random.uniform(kbv, (hidden_size,), jnp.float32, -bound, bound)

    out = self_attention(x, wq, bq, wk, bk, wv, bv, num_heads=num_attention_heads)
    out = jax.block_until_ready(out)

    ref = _reference(x, wq, bq, wk, bk, wv, bv, num_attention_heads)
    assert out.shape == (B, S, hidden_size)
    # bf16 matmul operands (f32 accumulation) + approx reciprocal => relaxed tolerance.
    assert jnp.allclose(out, ref, atol=2e-2, rtol=2e-2), "mismatch vs. JAX reference"

    print("KERNEL_OK")
</pallas_src>

<mosaic_0001>
module attributes {stable_mosaic.version = 11 : i64} {
  func.func @_qkv_proj_kernel(%arg0: i32, %arg1: memref<16x32xf32, #tpu.memory_space<vmem>>, %arg2: memref<32x96xbf16, #tpu.memory_space<vmem>>, %arg3: memref<1x96xf32, #tpu.memory_space<vmem>>, %arg4: memref<16x32xbf16, #tpu.memory_space<vmem>>, %arg5: memref<16x32xbf16, #tpu.memory_space<vmem>>, %arg6: memref<16x32xbf16, #tpu.memory_space<vmem>>) attributes {dimension_semantics = [#tpu.dimension_semantics<parallel>], iteration_bounds = array<i64: 1>, scalar_prefetch = 0 : i64, scratch_operands = 0 : i64, tpu.core_type = #tpu.core_type<tc>, window_params = [{transform_indices = @transform_0, window_bounds = array<i64: 16, 32>}, {pipeline_mode = #tpu.pipeline_mode<synchronous>, transform_indices = @transform_1, window_bounds = array<i64: 32, 96>}, {pipeline_mode = #tpu.pipeline_mode<synchronous>, transform_indices = @transform_2, window_bounds = array<i64: 1, 96>}, {transform_indices = @transform_3, window_bounds = array<i64: 16, 32>}, {transform_indices = @transform_4, window_bounds = array<i64: 16, 32>}, {transform_indices = @transform_5, window_bounds = array<i64: 16, 32>}]} {
    %c0 = arith.constant 0 : index
    %c0_0 = arith.constant 0 : index
    %0 = vector.load %arg1[%c0, %c0_0] : memref<16x32xf32, #tpu.memory_space<vmem>>, vector<16x32xf32>
    %1 = arith.truncf %0 : vector<16x32xf32> to vector<16x32xbf16>
    %c0_1 = arith.constant 0 : index
    %c0_2 = arith.constant 0 : index
    %2 = vector.load %arg2[%c0_1, %c0_2] : memref<32x96xbf16, #tpu.memory_space<vmem>>, vector<32x96xbf16>
    %cst = arith.constant dense<0.000000e+00> : vector<16x96xf32>
    %3 = tpu.matmul %1, %2, %cst {dimension_numbers = #tpu.dot_dimension_numbers<[1], [0], [0], [1], [0, 0, 1, 1], [], []>} : vector<16x32xbf16>, vector<32x96xbf16>, vector<16x96xf32> -> vector<16x96xf32>
    %c0_3 = arith.constant 0 : index
    %c0_4 = arith.constant 0 : index
    %4 = vector.load %arg3[%c0_3, %c0_4] : memref<1x96xf32, #tpu.memory_space<vmem>>, vector<1x96xf32>
    %5 = vector.broadcast %4 : vector<1x96xf32> to vector<16x96xf32>
    %6 = arith.addf %3, %5 : vector<16x96xf32>
    %7 = vector.extract_strided_slice %6 {offsets = [0, 0], sizes = [16, 32], strides = [1, 1]} : vector<16x96xf32> to vector<16x32xf32>
    %8 = arith.truncf %7 : vector<16x32xf32> to vector<16x32xbf16>
    %c0_5 = arith.constant 0 : index
    %c0_6 = arith.constant 0 : index
    %9 = vector.load %arg4[%c0_5, %c0_6] : memref<16x32xbf16, #tpu.memory_space<vmem>>, vector<16x32xbf16>
    tpu.vector_store %arg4[%c0_5, %c0_6], %8 {strides = array<i32>} : memref<16x32xbf16, #tpu.memory_space<vmem>>, vector<16x32xbf16>,
    %10 = vector.extract_strided_slice %6 {offsets = [0, 32], sizes = [16, 32], strides = [1, 1]} : vector<16x96xf32> to vector<16x32xf32>
    %11 = arith.truncf %10 : vector<16x32xf32> to vector<16x32xbf16>
    %c0_7 = arith.constant 0 : index
    %c0_8 = arith.constant 0 : index
    %12 = vector.load %arg5[%c0_7, %c0_8] : memref<16x32xbf16, #tpu.memory_space<vmem>>, vector<16x32xbf16>
    tpu.vector_store %arg5[%c0_7, %c0_8], %11 {strides = array<i32>} : memref<16x32xbf16, #tpu.memory_space<vmem>>, vector<16x32xbf16>,
    %13 = vector.extract_strided_slice %6 {offsets = [0, 64], sizes = [16, 32], strides = [1, 1]} : vector<16x96xf32> to vector<16x32xf32>
    %14 = arith.truncf %13 : vector<16x32xf32> to vector<16x32xbf16>
    %c0_9 = arith.constant 0 : index
    %c0_10 = arith.constant 0 : index
    %15 = vector.load %arg6[%c0_9, %c0_10] : memref<16x32xbf16, #tpu.memory_space<vmem>>, vector<16x32xbf16>
    tpu.vector_store %arg6[%c0_9, %c0_10], %14 {strides = array<i32>} : memref<16x32xbf16, #tpu.memory_space<vmem>>, vector<16x32xbf16>,
    return
  }
  func.func @transform_0(%arg0: i32) -> (i32, i32) {
    %c0_i32 = arith.constant 0 : i32
    %c0_i32_0 = arith.constant 0 : i32
    return %arg0, %c0_i32 : i32, i32
  }
  func.func @transform_1(%arg0: i32) -> (i32, i32) {
    %c0_i32 = arith.constant 0 : i32
    %c0_i32_0 = arith.constant 0 : i32
    %c0_i32_1 = arith.constant 0 : i32
    return %c0_i32, %c0_i32_0 : i32, i32
  }
  func.func @transform_2(%arg0: i32) -> (i32, i32) {
    %c0_i32 = arith.constant 0 : i32
    %c0_i32_0 = arith.constant 0 : i32
    %c0_i32_1 = arith.constant 0 : i32
    return %c0_i32, %c0_i32_0 : i32, i32
  }
  func.func @transform_3(%arg0: i32) -> (i32, i32) {
    %c0_i32 = arith.constant 0 : i32
    %c0_i32_0 = arith.constant 0 : i32
    return %arg0, %c0_i32 : i32, i32
  }
  func.func @transform_4(%arg0: i32) -> (i32, i32) {
    %c0_i32 = arith.constant 0 : i32
    %c0_i32_0 = arith.constant 0 : i32
    return %arg0, %c0_i32 : i32, i32
  }
  func.func @transform_5(%arg0: i32) -> (i32, i32) {
    %c0_i32 = arith.constant 0 : i32
    %c0_i32_0 = arith.constant 0 : i32
    return %arg0, %c0_i32 : i32, i32
  }
}

</mosaic_0001>

<llo_original>
// kernel: tpu_custom_call.1
$region0: #{tpu_custom_call.1}
  #allocation0 [shape = 'u32[]', space=smem, size = 0x4, offset = 0x4, fixed_abs, tag = 'smem constant byte address 0x4 - core index']
  #allocation1 [shape = 'u32[144,128]{1,0:T(1,128)}', space=vmem, size = 0x12000, scoped, tag = 'internal scratch']
  %s0 = inlined_call_operand.hbm [shape: f32[16,32], index: 0, kind: input, shape index: {}]
  %s1 = inlined_call_operand.hbm [shape: bf16[32,96], index: 1, kind: input, shape index: {}]
  %s2 = inlined_call_operand.vmem [shape: f32[1,96], index: 2, kind: input, shape index: {}]
  %s3 = inlined_call_operand.hbm [shape: bf16[16,32], index: 3, kind: output, shape index: {0}]
  %s4 = inlined_call_operand.hbm [shape: bf16[16,32], index: 4, kind: output, shape index: {1}]
  %s5 = inlined_call_operand.hbm [shape: bf16[16,32], index: 5, kind: output, shape index: {2}]
  %6 = xla_tuple %s3, %s4, %s5
  %s7 = sld [smem:[#allocation0]]
  $region46: #{tpu_custom_call.1} parent=0
    _
  %s9 = ssub.s32 1, %s7
  %s10 = scalar_select 0, %s9, %s7
  $region1: #{tpu_custom_call.1} parent=0
    #allocation2 [shape = 'u8[8192]{0}', space=vmem, size = 0x2000, scoped, tag = 'input window, operand 0, single buffered']
    #allocation3 [shape = 's32[1]{0}', space=sflag, size = 0x4, scoped, tag = 'scoped memory for tpu_custom_call.1']
    #allocation4 [shape = 's32[1]{0}', space=sflag, size = 0x4, scoped, tag = 'scoped memory for tpu_custom_call.1']
    #allocation5 [shape = 'u8[8192]{0}', space=vmem, size = 0x2000, scoped, tag = 'input window, operand 1, single buffered']
    #allocation6 [shape = 's32[1]{0}', space=sflag, size = 0x4, scoped, tag = 'scoped memory for tpu_custom_call.1']
    #allocation7 [shape = 'u8[4096]{0}', space=vmem, size = 0x1000, scoped, tag = 'output window, operand 0, single buffered']
    #allocation8 [shape = 'u8[4096]{0}', space=vmem, size = 0x1000, scoped, tag = 'output window, operand 1, single buffered']
    #allocation9 [shape = 's32[1]{0}', space=sflag, size = 0x4, scoped, tag = 'scoped memory for tpu_custom_call.1']
    #allocation10 [shape = 'u8[4096]{0}', space=vmem, size = 0x1000, scoped, tag = 'output window, operand 2, single buffered']
    %11 = vsyncpa [#allocation3], 0
    %12 = vsyncpa [#allocation6], 0
    %13 = vsyncpa [#allocation4], 0
    %14 = vsyncpa [#allocation9], 0
    // Predicated region
    $region2: #{tpu_custom_call.1} parent=1 // pred_check
      _
    $region3: #{tpu_custom_call.1} parent=1 // pred_check_branch
      %16 = sbr.rel (0) target = $region5
    $region4: #{tpu_custom_call.1} parent=1 // pred_region
      %s18 = ssub.s32 256, 256
      %19 = vsyncadd [#allocation3], %s18
      %s20 = sshll.u32 [#allocation2], 4
      %s21 = int_to_ptr.vmem [resolvable:$true] %s20
      %26 = dma.hbm_to_vmem [thread:$0]  %s0, 256, %s21, [#allocation3], 128, 128, 8
    $region5: #{tpu_custom_call.1} parent=1 // pred_fallthru
      _
    // Predicated region
    $region6: #{tpu_custom_call.1} parent=1 // pred_check
      _
    $region7: #{tpu_custom_call.1} parent=1 // pred_check_branch
      %28 = sbr.rel (0) target = $region9
    $region8: #{tpu_custom_call.1} parent=1 // pred_region
      %s30 = ssub.s32 256, 256
      %31 = vsyncadd [#allocation6], %s30
      %s32 = sshll.u32 [#allocation5], 4
      %s33 = int_to_ptr.vmem [resolvable:$true] %s32
      %38 = dma.hbm_to_vmem [thread:$0]  %s1, 256, %s33, [#allocation6], 64, 64, 4
    $region9: #{tpu_custom_call.1} parent=1 // pred_fallthru
      _
    // Predicated region
    $region10: #{tpu_custom_call.1} parent=1 // pred_check
      _
    $region11: #{tpu_custom_call.1} parent=1 // pred_check_branch
      %40 = sbr.rel (0) target = $region13
    $region12: #{tpu_custom_call.1} parent=1 // pred_region
      _
    $region13: #{tpu_custom_call.1} parent=1 // pred_fallthru
      _
    // Predicated region
    $region14: #{tpu_custom_call.1} parent=1 // pred_check
      _
    $region15: #{tpu_custom_call.1} parent=1 // pred_check_branch
      %42 = sbr.rel (0) target = $region17
    $region16: #{tpu_custom_call.1} parent=1 // pred_region
      %43 = dma.done [#allocation3], 256
    $region17: #{tpu_custom_call.1} parent=1 // pred_fallthru
      _
    // Predicated region
    $region18: #{tpu_custom_call.1} parent=1 // pred_check
      _
    $region19: #{tpu_custom_call.1} parent=1 // pred_check_branch
      %45 = sbr.rel (0) target = $region21
    $region20: #{tpu_custom_call.1} parent=1 // pred_region
      %46 = dma.done [#allocation6], 256
    $region21: #{tpu_custom_call.1} parent=1 // pred_fallthru
      _
    %v48 = vld [vmem:[#allocation2] sm:$0xff]
    %v49 = vld [vmem:[#allocation2 + $0x8] sm:$0xff]
    %v50 = vpack.c.bf16 %v49, %v48
    %v51 = vld [vmem:[#allocation5] sm:$0xf]
    %v52 = vld [vmem:[#allocation5 + $0x4] sm:$0xf]
    %v53 = vld [vmem:[#allocation5 + $0x8] sm:$0xf]
    %v54 = vld [vmem:[#allocation5 + $0xc] sm:$0xf]
    %v55 = vld [vmem:[%s2] sm:$0x1]
    %v57 = vlaneseq
    %v58 = vshrl.u32 %v57, 7
    %v59 = vsub.s32 0, %v58
    %v60 = vrot.slane %v55, %v59
    %v66 = vunpack.c.l.b16 %v51
    %v67 = vunpack.c.l.b16 %v52
    %v68 = vunpack.c.l.b16 %v53
    %v69 = vunpack.c.l.b16 %v54
    %v70 = vpack.c.b16 %v67, %v66
    %v71 = vpack.c.b16 %v69, %v68
    %vm74 = vcmask 261120
    %v76 = vsel %vm74, %v50, 0
    %78 = vmatprep.subr.bf16.mxu0 0
    %79 = vmatpush1.bf16.msra.mxu0 %v70
    %80 = vmatprep.subr.bf16.mxu0 0
    %81 = vmatpush1.bf16.msra.mxu0 %v71
    %82 = vmatprep.subr.bf16.mxu0 0
    %83 = vmatpush1.bf16.msra.mxu0 0
    %84 = vmatprep.subr.bf16.mxu0 0
    %85 = vmatpush1.bf16.msra.mxu0 0
    %86 = vmatprep.subr.bf16.mxu0 0
    %87 = vmatpush1.bf16.msra.mxu0 0
    %88 = vmatprep.subr.bf16.mxu0 0
    %89 = vmatpush1.bf16.msra.mxu0 0
    %90 = vmatprep.subr.bf16.mxu0 0
    %91 = vmatpush1.bf16.msra.mxu0 0
    %92 = vmatprep.subr.bf16.mxu0 0
    %93 = vmatpush1.bf16.msra.mxu0 0
    %94 = vmatprep.subr.bf16.mxu0 0
    %95 = vmatpush1.bf16.msra.mxu0 0
    %96 = vmatprep.subr.bf16.mxu0 0
    %97 = vmatpush1.bf16.msra.mxu0 0
    %98 = vmatprep.subr.bf16.mxu0 0
    %99 = vmatpush1.bf16.msra.mxu0 0
    %100 = vmatprep.subr.bf16.mxu0 0
    %101 = vmatpush1.bf16.msra.mxu0 0
    %102 = vmatprep.subr.bf16.mxu0 0
    %103 = vmatpush1.bf16.msra.mxu0 0
    %104 = vmatprep.subr.bf16.mxu0 0
    %105 = vmatpush1.bf16.msra.mxu0 0
    %106 = vmatprep.subr.bf16.mxu0 0
    %107 = vmatpush1.bf16.msra.mxu0 0
    %108 = vmatprep.subr.bf16.mxu0 0
    %109 = vmatpush1.bf16.msra.mxu0 0
    %110 = vmatprep.mubr.bf16.mxu0 0
    %111 = vmatmul.mubr.bf16.gmra.mrb[0].mxu0 %v76
    %v112 = vpop.f32.mrb[0].mxu0
    %v113 = vadd.f32 %v60, %v112
    %v114 = vpop.f32.mrb[0].mxu0
    %v115 = vpop.f32.mrb[0].mxu0
    %v116 = vadd.f32 %v60, %v115
    %v117 = vpop.f32.mrb[0].mxu0
    %118 = vdwg.mxu0
    %v119 = vpack.c.bf16 %v116, %v113
    %v121 = vunpack.c.l.b16 %v119
    %v122 = vunpack.c.h.b16 %v119
    %v123 = vpack.c.b16 %v121, %v121
    %v124 = vpack.c.b16 %v122, %v122
    %vm127 = vcmask 257024
    %128 = vst.msk [vmem:[#allocation7] sm:$0xf] %vm127, %v123
    %129 = vst.msk [vmem:[#allocation7 + $0x4] sm:$0xf] %vm127, %v124
    %130 = vrot.lane.b32.xlu0 %v123, 96
    %v131 = vpop.permute.xlu0 %130
    %132 = vrot.lane.b32.xlu0 %v124, 96
    %v133 = vpop.permute.xlu0 %132
    %136 = vst.msk [vmem:[#allocation8] sm:$0xf] %vm127, %v131
    %137 = vst.msk [vmem:[#allocation8 + $0x4] sm:$0xf] %vm127, %v133
    %138 = vrot.lane.b32.xlu0 %v123, 64
    %v139 = vpop.permute.xlu0 %138
    %140 = vrot.lane.b32.xlu0 %v124, 64
    %v141 = vpop.permute.xlu0 %140
    %144 = vst.msk [vmem:[#allocation10] sm:$0xf] %vm127, %v139
    %145 = vst.msk [vmem:[#allocation10 + $0x4] sm:$0xf] %vm127, %v141
    // Predicated region
    $region22: #{tpu_custom_call.1} parent=1 // pred_check
      _
    $region23: #{tpu_custom_call.1} parent=1 // pred_check_branch
      %147 = sbr.rel (0) target = $region25
    $region24: #{tpu_custom_call.1} parent=1 // pred_region
      %s149 = ssub.s32 128, 128
      %150 = vsyncadd [#allocation4], %s149
      %s151 = sshll.u32 [#allocation7], 4
      %s152 = int_to_ptr.vmem [resolvable:$true] %s151
      %157 = dma.vmem_to_hbm [thread:$0]  %s152, 128, %s3, [#allocation4], 64, 64, 4
    $region25: #{tpu_custom_call.1} parent=1 // pred_fallthru
      _
    // Predicated region
    $region26: #{tpu_custom_call.1} parent=1 // pred_check
      _
    $region27: #{tpu_custom_call.1} parent=1 // pred_check_branch
      %159 = sbr.rel (0) target = $region29
    $region28: #{tpu_custom_call.1} parent=1 // pred_region
      %s161 = ssub.s32 128, 128
      %162 = vsyncadd [#allocation9], %s161
      %s163 = sshll.u32 [#allocation8], 4
      %s164 = int_to_ptr.vmem [resolvable:$true] %s163
      %169 = dma.vmem_to_hbm [thread:$0]  %s164, 128, %s4, [#allocation9], 64, 64, 4
    $region29: #{tpu_custom_call.1} parent=1 // pred_fallthru
      _
    // Predicated region
    $region30: #{tpu_custom_call.1} parent=1 // pred_check
      _
    $region31: #{tpu_custom_call.1} parent=1 // pred_check_branch
      %171 = sbr.rel (0) target = $region33
    $region32: #{tpu_custom_call.1} parent=1 // pred_region
      %s173 = ssub.s32 128, 128
      %174 = vsyncadd [#allocation9], %s173
      %s175 = sshll.u32 [#allocation10], 4
      %s176 = int_to_ptr.vmem [resolvable:$true] %s175
      %181 = dma.vmem_to_hbm [thread:$0]  %s176, 128, %s5, [#allocation9], 64, 64, 4
    $region33: #{tpu_custom_call.1} parent=1 // pred_fallthru
      _
    // Predicated region
    $region34: #{tpu_custom_call.1} parent=1 // pred_check
      _
    $region35: #{tpu_custom_call.1} parent=1 // pred_check_branch
      %183 = sbr.rel (0) target = $region37
    $region36: #{tpu_custom_call.1} parent=1 // pred_region
      %184 = dma.done [#allocation4], 128
    $region37: #{tpu_custom_call.1} parent=1 // pred_fallthru
      _
    // Predicated region
    $region38: #{tpu_custom_call.1} parent=1 // pred_check
      _
    $region39: #{tpu_custom_call.1} parent=1 // pred_check_branch
      %186 = sbr.rel (0) target = $region41
    $region40: #{tpu_custom_call.1} parent=1 // pred_region
      %187 = dma.done [#allocation9], 128
    $region41: #{tpu_custom_call.1} parent=1 // pred_fallthru
      _
    // Predicated region
    $region42: #{tpu_custom_call.1} parent=1 // pred_check
      _
    $region43: #{tpu_custom_call.1} parent=1 // pred_check_branch
      %189 = sbr.rel (0) target = $region45
    $region44: #{tpu_custom_call.1} parent=1 // pred_region
      %190 = dma.done [#allocation9], 128
    $region45: #{tpu_custom_call.1} parent=1 // pred_fallthru
      _
    %191 = vsyncpa [#allocation3], 1
    %192 = vsyncpa [#allocation6], 1
    %193 = vsyncpa [#allocation4], 1
    %194 = vsyncpa [#allocation9], 1

</llo_original>
